<compile_context>
chip_gen: v6e
topology: v6e:2x2x1
jax: 0.10.0
libtpu: 0.0.40
codegen_flags: <defaults>
</compile_context>

<pallas_src>
import functools

import jax
import jax.numpy as jnp
from jax import lax
from jax.experimental import pallas as pl
from jax.experimental.pallas import tpu as pltpu


def _round_up(x, m):
    return ((x + m - 1) // m) * m


def _clip_loss_kernel(scale_ref, rbias_ref, cbias_ref, img_ref, txt_ref,
                      out_ref,
                      l_row_ref, m_row_ref, l_col_ref, m_col_ref, acc_ref,
                      *, needs_mask):
    i = pl.program_id(0)
    j = pl.program_id(1)
    n_i = pl.num_programs(0)
    n_j = pl.num_programs(1)

    @pl.when(jnp.logical_and(i == 0, j == 0))
    def _init():
        acc_ref[0] = jnp.zeros_like(acc_ref[0])

    # One (TM, TN) logits tile on the MXU (native dtype inputs, f32 accumulate).
    # The logit scale is applied to the f32 tile so bf16 inputs are not
    # re-quantized by the scale.
    s = lax.dot_general(img_ref[...], txt_ref[...],
                        (((1,), (1,)), ((), ())),
                        preferred_element_type=jnp.float32)
    s = s * scale_ref[0]
    if needs_mask:
        # Additive bias: 0.0 on valid rows/cols, -1e30 on padded ones.
        s = s + rbias_ref[...] + cbias_ref[...]

    # Single full-tile exp, referenced to the (scalar) tile max.
    m_tile = jnp.max(s)
    p = jnp.exp(s - m_tile)
    r = jnp.sum(p, axis=1, keepdims=True)       # (TM, 1) row partial sums
    c = jnp.sum(p, axis=0, keepdims=True)       # (1, TN) col partial sums

    # ---- row-direction online LSE (CE over logits_per_image rows) ----------
    first_col = j == 0
    m_prev = jnp.where(first_col, -1e30, m_row_ref[0])
    l_prev = jnp.where(first_col, 0.0, l_row_ref[...])
    m_new = jnp.maximum(m_prev, m_tile)
    l_new = l_prev * jnp.exp(m_prev - m_new) + r * jnp.exp(m_tile - m_new)
    m_row_ref[0] = m_new
    l_row_ref[...] = l_new

    # ---- column-direction online LSE (CE over logits_per_text rows) --------
    first_row = i == 0
    mc_prev = jnp.where(first_row, -1e30, m_col_ref[j])
    lc_prev = jnp.where(first_row, 0.0, l_col_ref[j])
    mc_new = jnp.maximum(mc_prev, m_tile)
    lc_new = lc_prev * jnp.exp(mc_prev - mc_new) + c * jnp.exp(m_tile - mc_new)
    m_col_ref[j] = mc_new
    l_col_ref[j] = lc_new

    # ---- finalize this row block (last column block) ------------------------
    @pl.when(j == n_j - 1)
    def _row_done():
        lse_row = m_new + jnp.log(l_new)                     # (TM, 1)
        if needs_mask:
            lse_row = jnp.where(rbias_ref[...] == 0.0, lse_row, 0.0)
        acc_ref[0] = acc_ref[0] + jnp.sum(lse_row)

    # ---- finalize this column block (last row block) ------------------------
    @pl.when(i == n_i - 1)
    def _col_done():
        lse_col = mc_new + jnp.log(lc_new)                   # (1, TN)
        if needs_mask:
            lse_col = jnp.where(cbias_ref[...] == 0.0, lse_col, 0.0)
        acc_ref[0] = acc_ref[0] + jnp.sum(lse_col)

    # ---- write the scalar sum once, at the very last grid step --------------
    @pl.when(jnp.logical_and(i == n_i - 1, j == n_j - 1))
    def _done():
        out_ref[0, 0] = acc_ref[0]


def clip_loss(image_features, text_features, logit_scale, *,
              tile_m=1024, tile_n=256, vmem_budget_bytes=40 * 1024 * 1024):
    """CLIP contrastive loss (world_size == 1).

    image_features / text_features: (N, D) (bf16 feeds the MXU natively),
    logit_scale: scalar.  Returns an f32 scalar loss.
    """
    n, d = image_features.shape
    assert text_features.shape == (n, d)

    feat_bytes = jnp.dtype(image_features.dtype).itemsize

    # TN: lane/MXU aligned (multiple of 128; 256 matches the v6e/v7x MXU).
    # TM: tall (text is re-streamed once per row block -> AI ~ 2*TM flop/byte),
    #     multiple of 16 for bf16 sublane packing.
    tn = max(128, min(_round_up(tile_n, 128), _round_up(n, 128)))
    tm = max(16, min(_round_up(tile_m, 16), _round_up(n, 16)))
    n_pn = _round_up(n, tn)
    n_col_blk = n_pn // tn

    # Explicit VMEM budget: double-buffered feature tiles + f32 tile
    # temporaries + persistent scratch (relevant for v7x's 64 MiB VMEM).
    def vmem_est(tm_):
        return (2 * (tm_ + tn) * d * feat_bytes     # double-buffered img/txt tiles
                + 4 * tm_ * tn * 4                  # s/p f32 temporaries (headroom)
                + (tm_ + 2) * 128 * 4               # rbias block + l_row (lane-padded)
                + n_col_blk * 8 * tn * 4)           # persistent l_col scratch

    while vmem_est(tm) > vmem_budget_bytes and tm > 256:
        tm = max(256, _round_up(tm // 2, 16))

    n_pm = _round_up(n, tm)
    pad_m, pad_n = n_pm - n, n_pn - n
    needs_mask = (pad_m > 0) or (pad_n > 0)

    img = jnp.pad(image_features, ((0, pad_m), (0, 0))) if pad_m else image_features
    txt = jnp.pad(text_features, ((0, pad_n), (0, 0))) if pad_n else text_features

    scale_f = jnp.asarray(logit_scale, jnp.float32)
    scale_arr = scale_f.reshape(1)
    rbias = jnp.where(jnp.arange(n_pm) < n, 0.0, -1e30).astype(jnp.float32).reshape(n_pm, 1)
    cbias = jnp.where(jnp.arange(n_pn) < n, 0.0, -1e30).astype(jnp.float32).reshape(1, n_pn)

    grid = (n_pm // tm, n_col_blk)
    kernel = functools.partial(_clip_loss_kernel, needs_mask=needs_mask)

    lse_sum = pl.pallas_call(
        kernel,
        out_shape=jax.ShapeDtypeStruct((1, 1), jnp.float32),
        grid_spec=pltpu.PrefetchScalarGridSpec(
            num_scalar_prefetch=0,
            grid=grid,
            in_specs=[
                pl.BlockSpec(memory_space=pltpu.MemorySpace.SMEM),     # logit scale
                pl.BlockSpec((tm, 1), lambda i, j: (i, 0)),            # row bias
                pl.BlockSpec((1, tn), lambda i, j: (0, j)),            # col bias
                pl.BlockSpec((tm, d), lambda i, j: (i, 0)),            # image rows (resident per row block)
                # TODO(synk): if profiling shows exposed DMA at row-block boundaries,
                # add pipeline_mode=pl.Buffered(3) to this streamed text operand.
                pl.BlockSpec((tn, d), lambda i, j: (j, 0)),            # text rows -> logits columns (streamed)
            ],
            out_specs=pl.BlockSpec(memory_space=pltpu.MemorySpace.SMEM),
            scratch_shapes=[
                pltpu.VMEM((tm, 1), jnp.float32),              # l_row
                pltpu.SMEM((1,), jnp.float32),                 # m_row (scalar per row block)
                pltpu.VMEM((n_col_blk, 1, tn), jnp.float32),   # l_col (persists across grid)
                pltpu.SMEM((n_col_blk,), jnp.float32),         # m_col (scalar per col block)
                pltpu.SMEM((1,), jnp.float32),                 # loss accumulator
            ],
        ),
        compiler_params=pltpu.CompilerParams(
            dimension_semantics=("arbitrary", "arbitrary"),
            vmem_limit_bytes=int(min(max(vmem_est(tm) + (8 << 20), 32 << 20), 64 << 20)),
        ),
    )(scale_arr, rbias, cbias, img, txt)[0, 0]

    # Diagonal (correct-class) term: single fused O(N*D) XLA pass in the wrapper.
    diag_sum = jnp.sum(image_features.astype(jnp.float32)
                       * text_features.astype(jnp.float32))
    return (0.5 * lse_sum - scale_f * diag_sum) / n


def clip_loss_ref(image_features, text_features, logit_scale):
    """Pure-JAX reference (f32)."""
    logits = logit_scale * image_features @ text_features.T
    n = logits.shape[0]
    idx = jnp.arange(n)

    def ce(lgts):
        return jnp.mean(jax.nn.logsumexp(lgts, axis=1) - lgts[idx, idx])

    return 0.5 * (ce(logits) + ce(logits.T))


if __name__ == "__main__":
    # (name, N, D, dtype, tile_m, tile_n, tolerance)
    cases = [
        ("tiny_single_tile", 8, 32, jnp.float32, 1024, 256, 1e-4),
        ("multi_tile", 384, 64, jnp.float32, 128, 128, 1e-4),
        ("padded_masked", 200, 48, jnp.float32, 64, 128, 1e-4),
        ("default_tall_tiles", 300, 96, jnp.float32, 1024, 256, 1e-4),
        ("bf16_mxu", 256, 64, jnp.bfloat16, 128, 128, 3e-2),
    ]
    for name, N, D, dtype, tm, tn, tol in cases:
        key = jax.random.PRNGKey(0)
        k1, k2 = jax.random.split(key)
        img = jax.random.normal(k1, (N, D), dtype=jnp.float32)
        txt = jax.random.normal(k2, (N, D), dtype=jnp.float32)
        # CLIP normalizes its features before the loss.
        img = img / jnp.linalg.norm(img, axis=-1, keepdims=True)
        txt = txt / jnp.linalg.norm(txt, axis=-1, keepdims=True)
        logit_scale = jnp.float32(10.0)

        img_d = img.astype(dtype)
        txt_d = txt.astype(dtype)

        loss = clip_loss(img_d, txt_d, logit_scale, tile_m=tm, tile_n=tn)
        loss = jax.block_until_ready(loss)

        ref = clip_loss_ref(img_d.astype(jnp.float32),
                            txt_d.astype(jnp.float32), logit_scale)
        assert jnp.allclose(loss, ref, rtol=tol, atol=tol), (name, float(loss), float(ref))

    print("KERNEL_OK")
</pallas_src>

<mosaic_0001>
module attributes {stable_mosaic.version = 11 : i64} {
  func.func @_clip_loss_kernel(%arg0: i32, %arg1: i32, %arg2: memref<1xf32, #tpu.memory_space<smem>>, %arg3: memref<16x1xf32, #tpu.memory_space<vmem>>, %arg4: memref<1x128xf32, #tpu.memory_space<vmem>>, %arg5: memref<16x32xf32, #tpu.memory_space<vmem>>, %arg6: memref<128x32xf32, #tpu.memory_space<vmem>>, %arg7: memref<1x1xf32, #tpu.memory_space<smem>>, %arg8: memref<16x1xf32, #tpu.memory_space<vmem>>, %arg9: memref<1xf32, #tpu.memory_space<smem>>, %arg10: memref<1x1x128xf32, #tpu.memory_space<vmem>>, %arg11: memref<1xf32, #tpu.memory_space<smem>>, %arg12: memref<1xf32, #tpu.memory_space<smem>>) attributes {dimension_semantics = [#tpu.dimension_semantics<arbitrary>, #tpu.dimension_semantics<arbitrary>], iteration_bounds = array<i64: 1, 1>, scalar_prefetch = 0 : i64, scratch_operands = 5 : i64, tpu.core_type = #tpu.core_type<tc>, window_params = [{transform_indices = @transform_0, window_bounds = array<i64: 1>}, {transform_indices = @transform_1, window_bounds = array<i64: 16, 1>}, {transform_indices = @transform_2, window_bounds = array<i64: 1, 128>}, {transform_indices = @transform_3, window_bounds = array<i64: 16, 32>}, {transform_indices = @transform_4, window_bounds = array<i64: 128, 32>}, {transform_indices = @transform_5, window_bounds = array<i64: 1, 1>}]} {
    %c0_i32 = arith.constant 0 : i32
    %0 = arith.cmpi eq, %arg0, %c0_i32 : i32
    %c0_i32_0 = arith.constant 0 : i32
    %1 = arith.cmpi eq, %arg1, %c0_i32_0 : i32
    %2 = arith.andi %0, %1 : i1
    %3 = arith.extui %2 : i1 to i32
    %c0_i32_1 = arith.constant 0 : i32
    %4 = arith.cmpi ne, %3, %c0_i32_1 : i32
    scf.if %4 {
      %cst_36 = arith.constant 0.000000e+00 : f32
      %c0_37 = arith.constant 0 : index
      %82 = memref.load %arg12[%c0_37] : memref<1xf32, #tpu.memory_space<smem>>
      memref.store %cst_36, %arg12[%c0_37] : memref<1xf32, #tpu.memory_space<smem>>
    } else {
    }
    %c0 = arith.constant 0 : index
    %c0_2 = arith.constant 0 : index
    %5 = vector.load %arg5[%c0, %c0_2] : memref<16x32xf32, #tpu.memory_space<vmem>>, vector<16x32xf32>
    %c0_3 = arith.constant 0 : index
    %c0_4 = arith.constant 0 : index
    %6 = vector.load %arg6[%c0_3, %c0_4] : memref<128x32xf32, #tpu.memory_space<vmem>>, vector<128x32xf32>
    %cst = arith.constant dense<0.000000e+00> : vector<16x128xf32>
    %7 = tpu.matmul %5, %6, %cst {dimension_numbers = #tpu.dot_dimension_numbers<[1], [1], [0], [0], [0, 0, 1, 0], [], []>} : vector<16x32xf32>, vector<128x32xf32>, vector<16x128xf32> -> vector<16x128xf32>
    %c0_5 = arith.constant 0 : index
    %8 = memref.load %arg2[%c0_5] : memref<1xf32, #tpu.memory_space<smem>>
    %9 = vector.broadcast %8 : f32 to vector<16x128xf32>
    %10 = arith.mulf %7, %9 : vector<16x128xf32>
    %c0_6 = arith.constant 0 : index
    %c0_7 = arith.constant 0 : index
    %11 = vector.load %arg3[%c0_6, %c0_7] : memref<16x1xf32, #tpu.memory_space<vmem>>, vector<16x1xf32>
    %12 = vector.broadcast %11 : vector<16x1xf32> to vector<16x128xf32>
    %13 = arith.addf %10, %12 : vector<16x128xf32>
    %c0_8 = arith.constant 0 : index
    %c0_9 = arith.constant 0 : index
    %14 = vector.load %arg4[%c0_8, %c0_9] : memref<1x128xf32, #tpu.memory_space<vmem>>, vector<1x128xf32>
    %15 = vector.broadcast %14 : vector<1x128xf32> to vector<16x128xf32>
    %16 = arith.addf %13, %15 : vector<16x128xf32>
    %17 = vector.shape_cast %16 : vector<16x128xf32> to vector<1x16x128xf32>
    %cst_10 = arith.constant dense<0xFF800000> : vector<1xf32>
    %18 = vector.multi_reduction <maximumf>, %17, %cst_10 [1, 2] : vector<1x16x128xf32> to vector<1xf32>
    %19 = vector.shape_cast %18 : vector<1xf32> to vector<1x1x1xf32>
    %20 = vector.extract %19[0, 0, 0] : f32 from vector<1x1x1xf32>
    %21 = vector.broadcast %20 : f32 to vector<16x128xf32>
    %22 = arith.subf %16, %21 : vector<16x128xf32>
    %23 = math.exp %22 : vector<16x128xf32>
    %cst_11 = arith.constant dense<0.000000e+00> : vector<16xf32>
    %24 = vector.multi_reduction <add>, %23, %cst_11 [1] : vector<16x128xf32> to vector<16xf32>
    %25 = vector.shape_cast %24 : vector<16xf32> to vector<16x1xf32>
    %cst_12 = arith.constant dense<0.000000e+00> : vector<128xf32>
    %26 = vector.multi_reduction <add>, %23, %cst_12 [0] : vector<16x128xf32> to vector<128xf32>
    %27 = vector.shape_cast %26 : vector<128xf32> to vector<1x128xf32>
    %c0_i32_13 = arith.constant 0 : i32
    %28 = arith.cmpi eq, %arg1, %c0_i32_13 : i32
    %c0_14 = arith.constant 0 : index
    %29 = memref.load %arg9[%c0_14] : memref<1xf32, #tpu.memory_space<smem>>
    %cst_15 = arith.constant -1.000000e+30 : f32
    %30 = arith.select %28, %cst_15, %29 : f32
    %c0_16 = arith.constant 0 : index
    %c0_17 = arith.constant 0 : index
    %31 = vector.load %arg8[%c0_16, %c0_17] : memref<16x1xf32, #tpu.memory_space<vmem>>, vector<16x1xf32>
    %cst_18 = arith.constant 0.000000e+00 : f32
    %32 = vector.broadcast %cst_18 : f32 to vector<16x1xf32>
    %33 = arith.select %28, %32, %31 : vector<16x1xf32>
    %34 = arith.maximumf %30, %20 : f32
    %35 = arith.subf %30, %34 : f32
    %36 = math.exp %35 : f32
    %37 = vector.broadcast %36 : f32 to vector<16x1xf32>
    %38 = arith.mulf %33, %37 : vector<16x1xf32>
    %39 = arith.subf %20, %34 : f32
    %40 = math.exp %39 : f32
    %41 = vector.broadcast %40 : f32 to vector<16x1xf32>
    %42 = arith.mulf %25, %41 : vector<16x1xf32>
    %43 = arith.addf %38, %42 : vector<16x1xf32>
    %c0_19 = arith.constant 0 : index
    %44 = memref.load %arg9[%c0_19] : memref<1xf32, #tpu.memory_space<smem>>
    memref.store %34, %arg9[%c0_19] : memref<1xf32, #tpu.memory_space<smem>>
    %c0_20 = arith.constant 0 : index
    %c0_21 = arith.constant 0 : index
    %45 = vector.load %arg8[%c0_20, %c0_21] : memref<16x1xf32, #tpu.memory_space<vmem>>, vector<16x1xf32>
    tpu.vector_store %arg8[%c0_20, %c0_21], %43 {strides = array<i32>} : memref<16x1xf32, #tpu.memory_space<vmem>>, vector<16x1xf32>,
    %c0_i32_22 = arith.constant 0 : i32
    %46 = arith.cmpi eq, %arg0, %c0_i32_22 : i32
    %47 = arith.index_cast %arg1 : i32 to index
    %48 = memref.load %arg11[%47] : memref<1xf32, #tpu.memory_space<smem>>
    %cst_23 = arith.constant -1.000000e+30 : f32
    %49 = arith.select %46, %cst_23, %48 : f32
    %50 = arith.index_cast %arg1 : i32 to index
    %c0_24 = arith.constant 0 : index
    %c0_25 = arith.constant 0 : index
    %51 = vector.load %arg10[%50, %c0_24, %c0_25] : memref<1x1x128xf32, #tpu.memory_space<vmem>>, vector<1x1x128xf32>
    %52 = vector.shape_cast %51 : vector<1x1x128xf32> to vector<1x128xf32>
    %cst_26 = arith.constant 0.000000e+00 : f32
    %53 = vector.broadcast %cst_26 : f32 to vector<1x128xf32>
    %54 = arith.select %46, %53, %52 : vector<1x128xf32>
    %55 = arith.maximumf %49, %20 : f32
    %56 = arith.subf %49, %55 : f32
    %57 = math.exp %56 : f32
    %58 = vector.broadcast %57 : f32 to vector<1x128xf32>
    %59 = arith.mulf %54, %58 : vector<1x128xf32>
    %60 = arith.subf %20, %55 : f32
    %61 = math.exp %60 : f32
    %62 = vector.broadcast %61 : f32 to vector<1x128xf32>
    %63 = arith.mulf %27, %62 : vector<1x128xf32>
    %64 = arith.addf %59, %63 : vector<1x128xf32>
    %65 = arith.index_cast %arg1 : i32 to index
    %66 = memref.load %arg11[%65] : memref<1xf32, #tpu.memory_space<smem>>
    memref.store %55, %arg11[%65] : memref<1xf32, #tpu.memory_space<smem>>
    %67 = arith.index_cast %arg1 : i32 to index
    %c0_27 = arith.constant 0 : index
    %c0_28 = arith.constant 0 : index
    %68 = vector.load %arg10[%67, %c0_27, %c0_28] : memref<1x1x128xf32, #tpu.memory_space<vmem>>, vector<1x1x128xf32>
    %69 = vector.shape_cast %68 : vector<1x1x128xf32> to vector<1x128xf32>
    %70 = vector.shape_cast %64 : vector<1x128xf32> to vector<1x1x128xf32>
    tpu.vector_store %arg10[%67, %c0_27, %c0_28], %70 {strides = array<i32>} : memref<1x1x128xf32, #tpu.memory_space<vmem>>, vector<1x1x128xf32>,
    %c0_i32_29 = arith.constant 0 : i32
    %71 = arith.cmpi eq, %arg1, %c0_i32_29 : i32
    %72 = arith.extui %71 : i1 to i32
    %c0_i32_30 = arith.constant 0 : i32
    %73 = arith.cmpi ne, %72, %c0_i32_30 : i32
    scf.if %73 {
      %82 = math.log %43 : vector<16x1xf32>
      %83 = vector.broadcast %34 : f32 to vector<16x1xf32>
      %84 = arith.addf %83, %82 : vector<16x1xf32>
      %c0_36 = arith.constant 0 : index
      %c0_37 = arith.constant 0 : index
      %85 = vector.load %arg3[%c0_36, %c0_37] : memref<16x1xf32, #tpu.memory_space<vmem>>, vector<16x1xf32>
      %cst_38 = arith.constant 0.000000e+00 : f32
      %86 = vector.broadcast %cst_38 : f32 to vector<16x1xf32>
      %87 = arith.cmpf oeq, %85, %86 : vector<16x1xf32>
      %cst_39 = arith.constant 0.000000e+00 : f32
      %88 = vector.broadcast %cst_39 : f32 to vector<16x1xf32>
      %89 = arith.select %87, %84, %88 : vector<16x1xi1>, vector<16x1xf32>
      %c0_40 = arith.constant 0 : index
      %90 = memref.load %arg12[%c0_40] : memref<1xf32, #tpu.memory_space<smem>>
      %91 = vector.shape_cast %89 : vector<16x1xf32> to vector<1x16x1xf32>
      %cst_41 = arith.constant dense<0.000000e+00> : vector<1xf32>
      %92 = vector.multi_reduction <add>, %91, %cst_41 [1, 2] : vector<1x16x1xf32> to vector<1xf32>
      %93 = vector.shape_cast %92 : vector<1xf32> to vector<1x1x1xf32>
      %94 = vector.extract %93[0, 0, 0] : f32 from vector<1x1x1xf32>
      %95 = arith.addf %90, %94 : f32
      %c0_42 = arith.constant 0 : index
      %96 = memref.load %arg12[%c0_42] : memref<1xf32, #tpu.memory_space<smem>>
      memref.store %95, %arg12[%c0_42] : memref<1xf32, #tpu.memory_space<smem>>
    } else {
    }
    %c0_i32_31 = arith.constant 0 : i32
    %74 = arith.cmpi eq, %arg0, %c0_i32_31 : i32
    %75 = arith.extui %74 : i1 to i32
    %c0_i32_32 = arith.constant 0 : i32
    %76 = arith.cmpi ne, %75, %c0_i32_32 : i32
    scf.if %76 {
      %82 = math.log %64 : vector<1x128xf32>
      %83 = vector.broadcast %55 : f32 to vector<1x128xf32>
      %84 = arith.addf %83, %82 : vector<1x128xf32>
      %c0_36 = arith.constant 0 : index
      %c0_37 = arith.constant 0 : index
      %85 = vector.load %arg4[%c0_36, %c0_37] : memref<1x128xf32, #tpu.memory_space<vmem>>, vector<1x128xf32>
      %cst_38 = arith.constant 0.000000e+00 : f32
      %86 = vector.broadcast %cst_38 : f32 to vector<1x128xf32>
      %87 = arith.cmpf oeq, %85, %86 : vector<1x128xf32>
      %cst_39 = arith.constant 0.000000e+00 : f32
      %88 = vector.broadcast %cst_39 : f32 to vector<1x128xf32>
      %89 = arith.select %87, %84, %88 : vector<1x128xi1>, vector<1x128xf32>
      %c0_40 = arith.constant 0 : index
      %90 = memref.load %arg12[%c0_40] : memref<1xf32, #tpu.memory_space<smem>>
      %91 = vector.shape_cast %89 : vector<1x128xf32> to vector<1x1x128xf32>
      %cst_41 = arith.constant dense<0.000000e+00> : vector<1xf32>
      %92 = vector.multi_reduction <add>, %91, %cst_41 [1, 2] : vector<1x1x128xf32> to vector<1xf32>
      %93 = vector.shape_cast %92 : vector<1xf32> to vector<1x1x1xf32>
      %94 = vector.extract %93[0, 0, 0] : f32 from vector<1x1x1xf32>
      %95 = arith.addf %90, %94 : f32
      %c0_42 = arith.constant 0 : index
      %96 = memref.load %arg12[%c0_42] : memref<1xf32, #tpu.memory_space<smem>>
      memref.store %95, %arg12[%c0_42] : memref<1xf32, #tpu.memory_space<smem>>
    } else {
    }
    %c0_i32_33 = arith.constant 0 : i32
    %77 = arith.cmpi eq, %arg0, %c0_i32_33 : i32
    %c0_i32_34 = arith.constant 0 : i32
    %78 = arith.cmpi eq, %arg1, %c0_i32_34 : i32
    %79 = arith.andi %77, %78 : i1
    %80 = arith.extui %79 : i1 to i32
    %c0_i32_35 = arith.constant 0 : i32
    %81 = arith.cmpi ne, %80, %c0_i32_35 : i32
    scf.if %81 {
      %c0_36 = arith.constant 0 : index
      %82 = memref.load %arg12[%c0_36] : memref<1xf32, #tpu.memory_space<smem>>
      %c0_37 = arith.constant 0 : index
      %c0_38 = arith.constant 0 : index
      %83 = memref.load %arg7[%c0_37, %c0_38] : memref<1x1xf32, #tpu.memory_space<smem>>
      memref.store %82, %arg7[%c0_37, %c0_38] : memref<1x1xf32, #tpu.memory_space<smem>>
    } else {
    }
    return
  }
  func.func @transform_0(%arg0: i32, %arg1: i32) -> i32 {
    %c0_i32 = arith.constant 0 : i32
    %c0_i32_0 = arith.constant 0 : i32
    return %c0_i32 : i32
  }
  func.func @transform_1(%arg0: i32, %arg1: i32) -> (i32, i32) {
    %c0_i32 = arith.constant 0 : i32
    %c0_i32_0 = arith.constant 0 : i32
    return %arg0, %c0_i32 : i32, i32
  }
  func.func @transform_2(%arg0: i32, %arg1: i32) -> (i32, i32) {
    %c0_i32 = arith.constant 0 : i32
    %c0_i32_0 = arith.constant 0 : i32
    return %c0_i32, %arg1 : i32, i32
  }
  func.func @transform_3(%arg0: i32, %arg1: i32) -> (i32, i32) {
    %c0_i32 = arith.constant 0 : i32
    %c0_i32_0 = arith.constant 0 : i32
    return %arg0, %c0_i32 : i32, i32
  }
  func.func @transform_4(%arg0: i32, %arg1: i32) -> (i32, i32) {
    %c0_i32 = arith.constant 0 : i32
    %c0_i32_0 = arith.constant 0 : i32
    return %arg1, %c0_i32 : i32, i32
  }
  func.func @transform_5(%arg0: i32, %arg1: i32) -> (i32, i32) {
    %c0_i32 = arith.constant 0 : i32
    %c0_i32_0 = arith.constant 0 : i32
    %c0_i32_1 = arith.constant 0 : i32
    return %c0_i32, %c0_i32_0 : i32, i32
  }
}

</mosaic_0001>

<llo_original>
// kernel: tpu_custom_call.1
$region0: #{tpu_custom_call.1}
  #allocation0 [shape = 'u32[]', space=smem, size = 0x4, offset = 0x4, fixed_abs, tag = 'smem constant byte address 0x4 - core index']
  #allocation1 [shape = 'u32[144,128]{1,0:T(1,128)}', space=vmem, size = 0x12000, scoped, tag = 'internal scratch']
  #allocation2 [shape = 'f32[16,1]{1,0:T(8,128)}', space=vmem, size = 0x2000, scoped, tag = 'scratch operand']
  #allocation3 [shape = 'f32[1]{0:T(128)}', space=smem, size = 0x200, scoped, tag = 'scratch operand']
  #allocation4 [shape = 'f32[1,1,128]{2,1,0:T(1,128)}', space=vmem, size = 0x200, scoped, tag = 'scratch operand']
  #allocation5 [shape = 'f32[1]{0:T(128)}', space=smem, size = 0x200, scoped, tag = 'scratch operand']
  #allocation6 [shape = 'f32[1]{0:T(128)}', space=smem, size = 0x200, scoped, tag = 'scratch operand']
  #allocation7 [shape = 'f32[1]{0:T(128)S(6)}', space=smem, size = 0x200, scoped, tag = 'scoped memory for tpu_custom_call.1']
  %s0 = inlined_call_operand.<no memory space> [shape: f32[1], index: 0, kind: input, shape index: {}]
  %s1 = inlined_call_operand.vmem [shape: f32[16,1], index: 1, kind: input, shape index: {}]
  %s2 = inlined_call_operand.vmem [shape: f32[1,128], index: 2, kind: input, shape index: {}]
  %s3 = inlined_call_operand.vmem [shape: f32[16,32], index: 3, kind: input, shape index: {}]
  %s4 = inlined_call_operand.vmem [shape: f32[128,32], index: 4, kind: input, shape index: {}]
  %s5 = inlined_call_operand.hbm [shape: f32[1,1], index: 5, kind: output, shape index: {}]
  %s6 = sld [smem:[#allocation0]]
  $region46: #{tpu_custom_call.1} parent=0
    _
  %s8 = ssub.s32 1, %s6
  %s9 = scalar_select 0, %s8, %s6
  %10 = sst [smem:[#allocation7]] %s0
  $region1: #{tpu_custom_call.1} parent=0
    #allocation8 [shape = 'u8[512]{0}', space=smem, size = 0x200, scoped, tag = 'output window, operand 0, single buffered']
    #allocation9 [shape = 's32[1]{0}', space=sflag, size = 0x4, scoped, tag = 'scoped memory for tpu_custom_call.1']
    %11 = vsyncpa [#allocation9], 0
    // Predicated region
    $region2: #{tpu_custom_call.1} parent=1 // pred_check
      _
    $region3: #{tpu_custom_call.1} parent=1 // pred_check_branch
      %13 = sbr.rel (0) target = $region5
    $region4: #{tpu_custom_call.1} parent=1 // pred_region
      _
    $region5: #{tpu_custom_call.1} parent=1 // pred_fallthru
      _
    // Predicated region
    $region6: #{tpu_custom_call.1} parent=1 // pred_check
      _
    $region7: #{tpu_custom_call.1} parent=1 // pred_check_branch
      %15 = sbr.rel (0) target = $region9
    $region8: #{tpu_custom_call.1} parent=1 // pred_region
      _
    $region9: #{tpu_custom_call.1} parent=1 // pred_fallthru
      _
    // Predicated region
    $region10: #{tpu_custom_call.1} parent=1 // pred_check
      _
    $region11: #{tpu_custom_call.1} parent=1 // pred_check_branch
      %17 = sbr.rel (0) target = $region13
    $region12: #{tpu_custom_call.1} parent=1 // pred_region
      _
    $region13: #{tpu_custom_call.1} parent=1 // pred_fallthru
      _
    // Predicated region
    $region14: #{tpu_custom_call.1} parent=1 // pred_check
      _
    $region15: #{tpu_custom_call.1} parent=1 // pred_check_branch
      %19 = sbr.rel (0) target = $region17
    $region16: #{tpu_custom_call.1} parent=1 // pred_region
      _
    $region17: #{tpu_custom_call.1} parent=1 // pred_fallthru
      _
    // Predicated region
    $region18: #{tpu_custom_call.1} parent=1 // pred_check
      _
    $region19: #{tpu_custom_call.1} parent=1 // pred_check_branch
      %21 = sbr.rel (0) target = $region21
    $region20: #{tpu_custom_call.1} parent=1 // pred_region
      _
    $region21: #{tpu_custom_call.1} parent=1 // pred_fallthru
      _
    %p22 = scmp.eq.s32.totalorder 0, 0
    %p23 = scmp.eq.s32.totalorder 0, 0
    %p24 = pnand %p22, %p23
    %p25 = pneg %p24
    // Predicated region
    $region22: #{tpu_custom_call.1} parent=1 // pred_check
      _
    $region23: #{tpu_custom_call.1} parent=1 // pred_check_branch
      %27 = sbr.rel (%p24) target = $region25
    $region24: #{tpu_custom_call.1} parent=1 // pred_region
      %s28 = scalar_lea.smem [#allocation6], 0
      %29 = sst [smem:[%s28]] 0.0
    $region25: #{tpu_custom_call.1} parent=1 // pred_fallthru
      _
    %v30 = vld [vmem:[%s3] sm:$0xff]
    %v31 = vld [vmem:[%s3 + $0x8] sm:$0xff]
    %v32 = vld [vmem:[%s4] sm:$0xff]
    %v33 = vld [vmem:[%s4 + $0x8] sm:$0xff]
    %v34 = vld [vmem:[%s4 + $0x10] sm:$0xff]
    %v35 = vld [vmem:[%s4 + $0x18] sm:$0xff]
    %v36 = vld [vmem:[%s4 + $0x20] sm:$0xff]
    %v37 = vld [vmem:[%s4 + $0x28] sm:$0xff]
    %v38 = vld [vmem:[%s4 + $0x30] sm:$0xff]
    %v39 = vld [vmem:[%s4 + $0x38] sm:$0xff]
    %v40 = vld [vmem:[%s4 + $0x40] sm:$0xff]
    %v41 = vld [vmem:[%s4 + $0x48] sm:$0xff]
    %v42 = vld [vmem:[%s4 + $0x50] sm:$0xff]
    %v43 = vld [vmem:[%s4 + $0x58] sm:$0xff]
    %v44 = vld [vmem:[%s4 + $0x60] sm:$0xff]
    %v45 = vld [vmem:[%s4 + $0x68] sm:$0xff]
    %v46 = vld [vmem:[%s4 + $0x70] sm:$0xff]
    %v47 = vld [vmem:[%s4 + $0x78] sm:$0xff]
    %vm48 = vcmask 261120
    %v50 = vsel %vm48, %v30, 0
    %v53 = vsel %vm48, %v31, 0
    %v56 = vsel %vm48, %v32, 0
    %v59 = vsel %vm48, %v33, 0
    %v62 = vsel %vm48, %v34, 0
    %v65 = vsel %vm48, %v35, 0
    %v68 = vsel %vm48, %v36, 0
    %v71 = vsel %vm48, %v37, 0
    %v74 = vsel %vm48, %v38, 0
    %v77 = vsel %vm48, %v39, 0
    %v80 = vsel %vm48, %v40, 0
    %v83 = vsel %vm48, %v41, 0
    %v86 = vsel %vm48, %v42, 0
    %v89 = vsel %vm48, %v43, 0
    %v92 = vsel %vm48, %v44, 0
    %v95 = vsel %vm48, %v45, 0
    %v98 = vsel %vm48, %v46, 0
    %v101 = vsel %vm48, %v47, 0
    %103 = vmatprep.subr.mxu0 0.0
    %104 = vmatpush1.xpose.msra.mxu0 %v101
    %105 = vmatprep.subr.mxu0 0.0
    %106 = vmatpush1.xpose.msra.mxu0 %v98
    %107 = vmatprep.subr.mxu0 0.0
    %108 = vmatpush1.xpose.msra.mxu0 %v95
    %109 = vmatprep.subr.mxu0 0.0
    %110 = vmatpush1.xpose.msra.mxu0 %v92
    %111 = vmatprep.subr.mxu0 0.0
    %112 = vmatpush1.xpose.msra.mxu0 %v89
    %113 = vmatprep.subr.mxu0 0.0
    %114 = vmatpush1.xpose.msra.mxu0 %v86
    %115 = vmatprep.subr.mxu0 0.0
    %116 = vmatpush1.xpose.msra.mxu0 %v83
    %117 = vmatprep.subr.mxu0 0.0
    %118 = vmatpush1.xpose.msra.mxu0 %v80
    %119 = vmatprep.subr.mxu0 0.0
    %120 = vmatpush1.xpose.msra.mxu0 %v77
    %121 = vmatprep.subr.mxu0 0.0
    %122 = vmatpush1.xpose.msra.mxu0 %v74
    %123 = vmatprep.subr.mxu0 0.0
    %124 = vmatpush1.xpose.msra.mxu0 %v71
    %125 = vmatprep.subr.mxu0 0.0
    %126 = vmatpush1.xpose.msra.mxu0 %v68
    %127 = vmatprep.subr.mxu0 0.0
    %128 = vmatpush1.xpose.msra.mxu0 %v65
    %129 = vmatprep.subr.mxu0 0.0
    %130 = vmatpush1.xpose.msra.mxu0 %v62
    %131 = vmatprep.subr.mxu0 0.0
    %132 = vmatpush1.xpose.msra.mxu0 %v59
    %133 = vmatprep.subr.mxu0 0.0
    %134 = vmatpush1.xpose.msra.mxu0 %v56
    %135 = vmatprep.subr.mxu0 0.0
    %136 = vmatpush2.xpose.msra.mxu0 0.0
    %137 = vmatprep.subr.mxu0 0.0
    %138 = vmatpush2.xpose.msra.mxu0 0.0
    %139 = vmatprep.subr.mxu0 0.0
    %140 = vmatpush2.xpose.msra.mxu0 0.0
    %141 = vmatprep.subr.mxu0 0.0
    %142 = vmatpush2.xpose.msra.mxu0 0.0
    %143 = vmatprep.subr.mxu0 0.0
    %144 = vmatpush2.xpose.msra.mxu0 0.0
    %145 = vmatprep.subr.mxu0 0.0
    %146 = vmatpush2.xpose.msra.mxu0 0.0
    %147 = vmatprep.subr.mxu0 0.0
    %148 = vmatpush2.xpose.msra.mxu0 0.0
    %149 = vmatprep.subr.mxu0 0.0
    %150 = vmatpush2.xpose.msra.mxu0 0.0
    %151 = vmatprep.subr.mxu0 0.0
    %152 = vmatpush2.xpose.msra.mxu0 0.0
    %153 = vmatprep.subr.mxu0 0.0
    %154 = vmatpush2.xpose.msra.mxu0 0.0
    %155 = vmatprep.subr.mxu0 0.0
    %156 = vmatpush2.xpose.msra.mxu0 0.0
    %157 = vmatprep.subr.mxu0 0.0
    %158 = vmatpush2.xpose.msra.mxu0 0.0
    %159 = vmatprep.subr.mxu0 0.0
    %160 = vmatpush2.xpose.msra.mxu0 0.0
    %161 = vmatprep.subr.mxu0 0.0
    %162 = vmatpush2.xpose.msra.mxu0 0.0
    %163 = vmatprep.subr.mxu0 0.0
    %164 = vmatpush2.xpose.msra.mxu0 0.0
    %165 = vmatprep.subr.mxu0 0.0
    %166 = vmatpush2.xpose.msra.mxu0 0.0
    %167 = vmatprep.mubr.f32.mxu0 0.0
    %168 = vmatmul.mubr.f32.gmra.mxu0 %v50
    %v169 = vpop.f32.mrf.mxu0
    %v170 = vadd.f32 0.0, %v169
    %v171 = vpop.f32.mrf.mxu0
    %172 = vmatprep.mubr.f32.mxu0 0.0
    %173 = vmatmul.mubr.f32.gmra.mxu0 %v53
    %v174 = vpop.f32.mrf.mxu0
    %v175 = vadd.f32 0.0, %v174
    %v176 = vpop.f32.mrf.mxu0
    %177 = vdwg.mxu0
    %s178 = sld [smem:[#allocation7]]
    %v179 = vstv %s178
    %v180 = vmul.f32 %v170, %v179
    %v181 = vmul.f32 %v175, %v179
    %v182 = vld [vmem:[%s1] sm:$0xff]
    %v183 = vld [vmem:[%s1 + $0x8] sm:$0xff]
    %185 = vset.pattern.permute.xlu0 0
    %186 = vperm.xlu0 %185, %v182
    %v187 = vpop.permute.xlu0 %186
    %190 = vset.pattern.permute.xlu0 0
    %191 = vperm.xlu0 %190, %v183
    %v192 = vpop.permute.xlu0 %191
    %v194 = vadd.f32 %v180, %v187
    %v195 = vadd.f32 %v181, %v192
    %v196 = vld [vmem:[%s2] sm:$0x1]
    %v198 = vlaneseq
    %v199 = vshrl.u32 %v198, 7
    %v200 = vsub.s32 0, %v199
    %v201 = vrot.slane %v196, %v200
    %v203 = vadd.f32 %v194, %v201
    %v204 = vadd.f32 %v195, %v201
    %v205 = vmax.f32 %v203, %v204
    %206 = vmax.xlane.f32.xlu0 %v205
    %v207 = vpop.xlane.xlu0 %206
    %v208 = vrot.slane %v207, 4
    %v209 = vmax.f32 %v207, %v208
    %v210 = vrot.slane %v209, 2
    %v211 = vmax.f32 %v209, %v210
    %v212 = vrot.slane %v211, 1
    %v213 = vmax.f32 %v211, %v212
    %s214 = vtos %v213
    %v215 = vstv %s214
    %v216 = vsub.f32 %v203, %v215
    %v217 = vsub.f32 %v204, %v215
    %v218 = vmul.f32 %v216, 1.442695
    %v219 = vpow.pop %v218
    %v220 = vmul.f32 %v217, 1.442695
    %v221 = vpow.pop %v220
    %222 = vadd.xlane.f32.xlu0 %v219
    %v223 = vpop.xlane.xlu0 %222
    %224 = vadd.xlane.f32.xlu0 %v221
    %v225 = vpop.xlane.xlu0 %224
    %v226 = vadd.f32 %v219, %v221
    %v227 = vrot.slane %v226, 4
    %v228 = vadd.f32 %v226, %v227
    %v229 = vrot.slane %v228, 2
    %v230 = vadd.f32 %v228, %v229
    %v231 = vrot.slane %v230, 1
    %v232 = vadd.f32 %v230, %v231
    %s233 = sld [smem:[#allocation3]]
    %s234 = scalar_select %p23, -1e+30, %s233
    %v235 = vld [vmem:[#allocation2] sm:$0xff]
    %v236 = vld [vmem:[#allocation2 + $0x8] sm:$0xff]
    %s237 = scalar_select %p23, 1, 0
    %v238 = vstv %s237
    %vm239 = vcmp.eq.s32.totalorder %v238, 1
    %v240 = vsel %vm239, 0.0, %v235
    %v241 = vsel %vm239, 0.0, %v236
    %s242 = smax.f32 %s234, %s214
    %s243 = ssub.f32 %s234, %s242
    %v244 = vstv %s243
    %v245 = vmul.f32 %v244, 1.442695
    %v246 = vpow.pop %v245
    %s247 = vtos %v246
    %v248 = vstv %s247
    %v249 = vmul.f32 %v240, %v248
    %v250 = vmul.f32 %v241, %v248
    %s251 = ssub.f32 %s214, %s242
    %v252 = vstv %s251
    %v253 = vmul.f32 %v252, 1.442695
    %v254 = vpow.pop %v253
    %s255 = vtos %v254
    %v256 = vstv %s255
    %v257 = vmul.f32 %v223, %v256
    %v258 = vmul.f32 %v225, %v256
    %v259 = vadd.f32 %v249, %v257
    %v260 = vadd.f32 %v250, %v258
    %s261 = scalar_lea.smem [#allocation3], 0
    %262 = sst [smem:[%s261]] %s242
    %vm263 = vcmask 7168
    %264 = vst.msk [vmem:[#allocation2] sm:$0xff] %vm263, %v259
    %265 = vst.msk [vmem:[#allocation2 + $0x8] sm:$0xff] %vm263, %v260
    %s266 = sld [smem:[#allocation5]]
    %s267 = scalar_select %p22, -1e+30, %s266
    %v268 = vld [vmem:[#allocation4] sm:$0x1]
    %s269 = scalar_select %p22, 1, 0
    %v270 = vstv %s269
    %vm271 = vcmp.eq.s32.totalorder %v270, 1
    %v272 = vsel %vm271, 0.0, %v268
    %s273 = smax.f32 %s267, %s214
    %s274 = ssub.f32 %s267, %s273
    %v275 = vstv %s274
    %v276 = vmul.f32 %v275, 1.442695
    %v277 = vpow.pop %v276
    %s278 = vtos %v277
    %v279 = vstv %s278
    %v280 = vmul.f32 %v272, %v279
    %s281 = ssub.f32 %s214, %s273
    %v282 = vstv %s281
    %v283 = vmul.f32 %v282, 1.442695
    %v284 = vpow.pop %v283
    %s285 = vtos %v284
    %v286 = vstv %s285
    %v287 = vmul.f32 %v232, %v286
    %v288 = vadd.f32 %v280, %v287
    %s289 = scalar_lea.smem [#allocation5], 0
    %290 = sst [smem:[%s289]] %s273
    %291 = vst [vmem:[#allocation4] sm:$0x1] %v288
    // Predicated region
    $region26: #{tpu_custom_call.1} parent=1 // pred_check
      %p292 = pneg %p23
    $region27: #{tpu_custom_call.1} parent=1 // pred_check_branch
      %294 = sbr.rel (%p292) target = $region29
    $region28: #{tpu_custom_call.1} parent=1 // pred_region
      %v295 = vlog2.pop %v259
      %v296 = vmul.f32 %v295, 0.6931472
      %v297 = vlog2.pop %v260
      %v298 = vmul.f32 %v297, 0.6931472
      %v299 = vstv %s242
      %v300 = vadd.f32 %v299, %v296
      %v301 = vadd.f32 %v299, %v298
      %v302 = vld [vmem:[%s1] sm:$0xff]
      %v303 = vld [vmem:[%s1 + $0x8] sm:$0xff]
      %vm304 = vcmp.eq.f32.partialorder %v302, 0.0
      %vm305 = vcmp.eq.f32.partialorder %v303, 0.0
      %v306 = vsel %vm304, %v300, 0.0
      %v307 = vsel %vm305, %v301, 0.0
      %s308 = sld [smem:[#allocation6]]
      %v309 = vsel %vm263, %v306, 0.0
      %v310 = vsel %vm263, %v307, 0.0
      %v311 = vadd.f32 %v309, %v310
      %312 = vadd.xlane.f32.xlu0 %v311
      %v313 = vpop.xlane.xlu0 %312
      %v314 = vrot.slane %v313, 4
      %v315 = vadd.f32 %v313, %v314
      %v316 = vrot.slane %v315, 2
      %v317 = vadd.f32 %v315, %v316
      %v318 = vrot.slane %v317, 1
      %v319 = vadd.f32 %v317, %v318
      %s320 = vtos %v319
      %s321 = sadd.f32 %s308, %s320
      %s322 = scalar_lea.smem [#allocation6], 0
      %323 = sst [smem:[%s322]] %s321
    $region29: #{tpu_custom_call.1} parent=1 // pred_fallthru
      _
    // Predicated region
    $region30: #{tpu_custom_call.1} parent=1 // pred_check
      %p324 = pneg %p22
    $region31: #{tpu_custom_call.1} parent=1 // pred_check_branch
      %326 = sbr.rel (%p324) target = $region33
    $region32: #{tpu_custom_call.1} parent=1 // pred_region
      %v327 = vlog2.pop %v288
      %v328 = vmul.f32 %v327, 0.6931472
      %v329 = vstv %s273
      %v330 = vadd.f32 %v329, %v328
      %v331 = vld [vmem:[%s2] sm:$0x1]
      %vm332 = vcmp.eq.f32.partialorder %v331, 0.0
      %v333 = vsel %vm332, %v330, 0.0
      %s334 = sld [smem:[#allocation6]]
      %vm335 = vcmask 1040384
      %v336 = vsel %vm335, %v333, 0.0
      %337 = vadd.xlane.f32.xlu0 %v336
      %v338 = vpop.xlane.xlu0 %337
      %v339 = vrot.slane %v338, 4
      %v340 = vadd.f32 %v338, %v339
      %v341 = vrot.slane %v340, 2
      %v342 = vadd.f32 %v340, %v341
      %v343 = vrot.slane %v342, 1
      %v344 = vadd.f32 %v342, %v343
      %s345 = vtos %v344
      %s346 = sadd.f32 %s334, %s345
      %s347 = scalar_lea.smem [#allocation6], 0
      %348 = sst [smem:[%s347]] %s346
    $region33: #{tpu_custom_call.1} parent=1 // pred_fallthru
      _
    // Predicated region
    $region34: #{tpu_custom_call.1} parent=1 // pred_check
      _
    $region35: #{tpu_custom_call.1} parent=1 // pred_check_branch
      %350 = sbr.rel (%p24) target = $region37
    $region36: #{tpu_custom_call.1} parent=1 // pred_region
      %s351 = sld [smem:[#allocation6]]
      %s352 = scalar_lea.smem [#allocation8], 0
      %353 = sst [smem:[%s352]] %s351
    $region37: #{tpu_custom_call.1} parent=1 // pred_fallthru
      _
    // Predicated region
    $region38: #{tpu_custom_call.1} parent=1 // pred_check
      _
    $region39: #{tpu_custom_call.1} parent=1 // pred_check_branch
      %355 = sbr.rel (0) target = $region41
    $region40: #{tpu_custom_call.1} parent=1 // pred_region
      %s357 = ssub.s32 16, 16
      %358 = vsyncadd [#allocation9], %s357
      %361 = dma.smem_to_hbm [#allocation8], 16, %s5, [#allocation9]
    $region41: #{tpu_custom_call.1} parent=1 // pred_fallthru
      _
    // Predicated region
    $region42: #{tpu_custom_call.1} parent=1 // pred_check
      _
    $region43: #{tpu_custom_call.1} parent=1 // pred_check_branch
      %363 = sbr.rel (0) target = $region45
    $region44: #{tpu_custom_call.1} parent=1 // pred_region
      %364 = dma.done [#allocation9], 16
    $region45: #{tpu_custom_call.1} parent=1 // pred_fallthru
      _
    %365 = sfence
    %366 = vsyncpa [#allocation9], 1

</llo_original>
